<compile_context>
chip_gen: v6e
topology: v6e:2x2x1
jax: 0.10.0
libtpu: 0.0.40
codegen_flags: <defaults>
</compile_context>

<pallas_src>
import jax
import jax.numpy as jnp
from jax.experimental import pallas as pl
from jax.experimental.pallas import tpu as pltpu


def _round_up(x, m):
    return (x + m - 1) // m * m


def ccs_matvec_kernel(x_ref, w_ref, y_ref):
    """x_ref: VMEM (TM, TD); w_ref: VMEM (TD, 1); y_ref: VMEM (TM, 1) f32, resident over the d axis."""
    @pl.when(pl.program_id(1) == 0)
    def _():
        y_ref[...] = jnp.zeros_like(y_ref)

    y_ref[...] += jnp.dot(x_ref[...], w_ref[...], preferred_element_type=jnp.float32)


def ccs_reporter_forward(x, probe_weight, probe_bias, scale, bias, ens="none"):
    """x: (n, v, k, d). Returns credences per CcsReporter.forward."""
    n, v, k, d = x.shape
    rows = n * v * k

    # --- tile sizing (generation-agnostic: <= ~4 MiB per x buffer) ---
    tm = 512 if rows >= 512 else _round_up(rows, 8)
    r_pad = _round_up(rows, tm)
    td_cap = max(128, ((4 * 1024 * 1024) // (tm * 4)) // 128 * 128)
    td = min(_round_up(d, 128), td_cap)
    d_pad = _round_up(d, td)

    # --- pad inputs with zeros (zeros do not change the dot product) ---
    x2 = x.reshape(rows, d).astype(jnp.float32)
    x2 = jnp.pad(x2, ((0, r_pad - rows), (0, d_pad - d)))
    w_col = jnp.pad(probe_weight.reshape(d).astype(jnp.float32), (0, d_pad - d))
    w_col = w_col.reshape(d_pad, 1)

    grid = (r_pad // tm, d_pad // td)
    vmem_need = 2 * (tm * td * 4) + 2 * (td * 4) + 2 * (tm * 4)
    vmem_limit = int(min(max(vmem_need + (8 << 20), 16 << 20), 48 << 20))

    y = pl.pallas_call(
        ccs_matvec_kernel,
        out_shape=jax.ShapeDtypeStruct((r_pad, 1), jnp.float32),
        grid=grid,
        in_specs=[
            pl.BlockSpec((tm, td), lambda i, j: (i, j)),      # x row/d tile
            pl.BlockSpec((td, 1), lambda i, j: (j, 0)),       # weight column tile
        ],
        out_specs=pl.BlockSpec((tm, 1), lambda i, j: (i, 0)), # resident across d axis
        compiler_params=pltpu.CompilerParams(
            dimension_semantics=("parallel", "arbitrary"),
            vmem_limit_bytes=vmem_limit,
        ),
    )(x2, w_col)

    # --- tiny epilogue on (n, v*k): mean-over-n, probe bias, Platt scaling ---
    y = y[:rows, 0].reshape(n, v * k)
    if n > 1:  # BurnsNorm special-cases N == 1 (no centering)
        y = y - jnp.mean(y, axis=0, keepdims=True)
    raw = y + probe_bias.reshape(())
    scores = (raw * scale.reshape(()) + bias.reshape(())).reshape(n, v, k)

    if ens == "none":
        return scores
    elif ens == "partial":
        return scores[..., 1] - scores[..., 0]
    elif ens == "full":
        return (scores[..., 1] - scores[..., 0]).mean(axis=-1)
    else:
        raise ValueError(f"Unknown ensemble type: {ens}")


def ccs_reporter_reference(x, probe_weight, probe_bias, scale, bias):
    """Pure-JAX reference matching the PyTorch forward (ens='none')."""
    n = x.shape[0]
    xc = x - x.mean(axis=0, keepdims=True) if n > 1 else x
    raw = jnp.einsum("nvkd,od->nvko", xc, probe_weight)[..., 0] + probe_bias.reshape(())
    return raw * scale.reshape(()) + bias.reshape(())


if __name__ == "__main__":
    # Small shapes: n examples, v variants, k=2 contrast classes, d hidden features
    n, v, k, d = 8, 2, 2, 32

    key = jax.random.PRNGKey(0)
    kx, kw, kb = jax.random.split(key, 3)

    x = jax.random.normal(kx, (n, v, k, d), dtype=jnp.float32)

    # Deterministic parameter init (shapes from CcsReporter.__init__):
    #   probe = nn.Linear(in_features=d, out_features=1, bias=True)
    #   scale = ones(1), bias = zeros(1)
    bound = 1.0 / (d ** 0.5)
    probe_weight = jax.random.uniform(kw, (1, d), jnp.float32, -bound, bound)
    probe_bias = jax.random.uniform(kb, (1,), jnp.float32, -bound, bound)
    scale = jnp.ones((1,), jnp.float32)
    bias = jnp.zeros((1,), jnp.float32)

    out = ccs_reporter_forward(x, probe_weight, probe_bias, scale, bias, ens="none")
    out = jax.block_until_ready(out)

    ref = ccs_reporter_reference(x, probe_weight, probe_bias, scale, bias)
    assert out.shape == (n, v, k), out.shape
    assert jnp.allclose(out, ref, atol=3e-5, rtol=1e-5), "mismatch vs reference"

    # TODO(synk): fit()/loss()/platt_scale() are training loops (LBFGS/Adam) and are
    # intentionally not implemented as kernels; only the forward pass is kernelized.
    print("KERNEL_OK")
</pallas_src>

<mosaic_0001>
module attributes {stable_mosaic.version = 11 : i64} {
  func.func @ccs_matvec_kernel(%arg0: i32, %arg1: i32, %arg2: memref<32x128xf32, #tpu.memory_space<vmem>>, %arg3: memref<128x1xf32, #tpu.memory_space<vmem>>, %arg4: memref<32x1xf32, #tpu.memory_space<vmem>>) attributes {dimension_semantics = [#tpu.dimension_semantics<parallel>, #tpu.dimension_semantics<arbitrary>], iteration_bounds = array<i64: 1, 1>, scalar_prefetch = 0 : i64, scratch_operands = 0 : i64, tpu.core_type = #tpu.core_type<tc>, window_params = [{transform_indices = @transform_0, window_bounds = array<i64: 32, 128>}, {transform_indices = @transform_1, window_bounds = array<i64: 128, 1>}, {transform_indices = @transform_2, window_bounds = array<i64: 32, 1>}]} {
    %c0_i32 = arith.constant 0 : i32
    %0 = arith.cmpi eq, %arg1, %c0_i32 : i32
    %1 = arith.extui %0 : i1 to i32
    %c0_i32_0 = arith.constant 0 : i32
    %2 = arith.cmpi ne, %1, %c0_i32_0 : i32
    scf.if %2 {
      %cst_8 = arith.constant 0.000000e+00 : f32
      %9 = vector.broadcast %cst_8 : f32 to vector<32x1xf32>
      %c0_9 = arith.constant 0 : index
      %c0_10 = arith.constant 0 : index
      %10 = vector.load %arg4[%c0_9, %c0_10] : memref<32x1xf32, #tpu.memory_space<vmem>>, vector<32x1xf32>
      tpu.vector_store %arg4[%c0_9, %c0_10], %9 {strides = array<i32>} : memref<32x1xf32, #tpu.memory_space<vmem>>, vector<32x1xf32>,
    } else {
    }
    %c0 = arith.constant 0 : index
    %c0_1 = arith.constant 0 : index
    %3 = vector.load %arg4[%c0, %c0_1] : memref<32x1xf32, #tpu.memory_space<vmem>>, vector<32x1xf32>
    %c0_2 = arith.constant 0 : index
    %c0_3 = arith.constant 0 : index
    %4 = vector.load %arg2[%c0_2, %c0_3] : memref<32x128xf32, #tpu.memory_space<vmem>>, vector<32x128xf32>
    %c0_4 = arith.constant 0 : index
    %c0_5 = arith.constant 0 : index
    %5 = vector.load %arg3[%c0_4, %c0_5] : memref<128x1xf32, #tpu.memory_space<vmem>>, vector<128x1xf32>
    %cst = arith.constant dense<0.000000e+00> : vector<32x1xf32>
    %6 = tpu.matmul %4, %5, %cst {dimension_numbers = #tpu.dot_dimension_numbers<[1], [0], [0], [1], [0, 0, 1, 1], [], []>} : vector<32x128xf32>, vector<128x1xf32>, vector<32x1xf32> -> vector<32x1xf32>
    %7 = arith.addf %3, %6 : vector<32x1xf32>
    %c0_6 = arith.constant 0 : index
    %c0_7 = arith.constant 0 : index
    %8 = vector.load %arg4[%c0_6, %c0_7] : memref<32x1xf32, #tpu.memory_space<vmem>>, vector<32x1xf32>
    tpu.vector_store %arg4[%c0_6, %c0_7], %7 {strides = array<i32>} : memref<32x1xf32, #tpu.memory_space<vmem>>, vector<32x1xf32>,
    return
  }
  func.func @transform_0(%arg0: i32, %arg1: i32) -> (i32, i32) {
    %c0_i32 = arith.constant 0 : i32
    return %arg0, %arg1 : i32, i32
  }
  func.func @transform_1(%arg0: i32, %arg1: i32) -> (i32, i32) {
    %c0_i32 = arith.constant 0 : i32
    %c0_i32_0 = arith.constant 0 : i32
    return %arg1, %c0_i32 : i32, i32
  }
  func.func @transform_2(%arg0: i32, %arg1: i32) -> (i32, i32) {
    %c0_i32 = arith.constant 0 : i32
    %c0_i32_0 = arith.constant 0 : i32
    return %arg0, %c0_i32 : i32, i32
  }
}

</mosaic_0001>

<llo_original>
// kernel: tpu_custom_call.1
$region0: #{tpu_custom_call.1}
  #allocation0 [shape = 'u32[]', space=smem, size = 0x4, offset = 0x4, fixed_abs, tag = 'smem constant byte address 0x4 - core index']
  #allocation1 [shape = 'u32[144,128]{1,0:T(1,128)}', space=vmem, size = 0x12000, scoped, tag = 'internal scratch']
  %s0 = inlined_call_operand.vmem [shape: f32[32,128], index: 0, kind: input, shape index: {}]
  %s1 = inlined_call_operand.vmem [shape: f32[128,1], index: 1, kind: input, shape index: {}]
  %s2 = inlined_call_operand.vmem [shape: f32[32,1], index: 2, kind: output, shape index: {}]
  %s3 = sld [smem:[#allocation0]]
  $region22: #{tpu_custom_call.1} parent=0
    _
  %s5 = ssub.s32 1, %s3
  %s6 = scalar_select 0, %s5, %s3
  // Predicated region
  $region2: #{tpu_custom_call.1} parent=0 // pred_check
    _
  $region3: #{tpu_custom_call.1} parent=0 // pred_check_branch
    %8 = sbr.rel (0) target = $region5
  $region4: #{tpu_custom_call.1} parent=0 // pred_region
    _
  $region5: #{tpu_custom_call.1} parent=0 // pred_fallthru
    _
  // Predicated region
  $region6: #{tpu_custom_call.1} parent=0 // pred_check
    _
  $region7: #{tpu_custom_call.1} parent=0 // pred_check_branch
    %10 = sbr.rel (0) target = $region9
  $region8: #{tpu_custom_call.1} parent=0 // pred_region
    _
  $region9: #{tpu_custom_call.1} parent=0 // pred_fallthru
    _
  %p11 = scmp.eq.s32.totalorder 0, 0
  // Predicated region
  $region10: #{tpu_custom_call.1} parent=0 // pred_check
    %p12 = pneg %p11
  $region11: #{tpu_custom_call.1} parent=0 // pred_check_branch
    %14 = sbr.rel (%p12) target = $region13
  $region12: #{tpu_custom_call.1} parent=0 // pred_region
    %vm15 = vcmask 7168
    %16 = vst.msk [vmem:[%s2] sm:$0xff] %vm15, 0.0
    %17 = vst.msk [vmem:[%s2 + $0x8] sm:$0xff] %vm15, 0.0
    %18 = vst.msk [vmem:[%s2 + $0x10] sm:$0xff] %vm15, 0.0
    %19 = vst.msk [vmem:[%s2 + $0x18] sm:$0xff] %vm15, 0.0
  $region13: #{tpu_custom_call.1} parent=0 // pred_fallthru
    _
  %v20 = vld [vmem:[%s2] sm:$0xff]
  %v21 = vld [vmem:[%s2 + $0x8] sm:$0xff]
  %v22 = vld [vmem:[%s2 + $0x10] sm:$0xff]
  %v23 = vld [vmem:[%s2 + $0x18] sm:$0xff]
  %v24 = vld [vmem:[%s0] sm:$0xff]
  %v25 = vld [vmem:[%s0 + $0x8] sm:$0xff]
  %v26 = vld [vmem:[%s0 + $0x10] sm:$0xff]
  %v27 = vld [vmem:[%s0 + $0x18] sm:$0xff]
  %v28 = vld [vmem:[%s1] sm:$0xff]
  %v29 = vld [vmem:[%s1 + $0x8] sm:$0xff]
  %v30 = vld [vmem:[%s1 + $0x10] sm:$0xff]
  %v31 = vld [vmem:[%s1 + $0x18] sm:$0xff]
  %v32 = vld [vmem:[%s1 + $0x20] sm:$0xff]
  %v33 = vld [vmem:[%s1 + $0x28] sm:$0xff]
  %v34 = vld [vmem:[%s1 + $0x30] sm:$0xff]
  %v35 = vld [vmem:[%s1 + $0x38] sm:$0xff]
  %v36 = vld [vmem:[%s1 + $0x40] sm:$0xff]
  %v37 = vld [vmem:[%s1 + $0x48] sm:$0xff]
  %v38 = vld [vmem:[%s1 + $0x50] sm:$0xff]
  %v39 = vld [vmem:[%s1 + $0x58] sm:$0xff]
  %v40 = vld [vmem:[%s1 + $0x60] sm:$0xff]
  %v41 = vld [vmem:[%s1 + $0x68] sm:$0xff]
  %v42 = vld [vmem:[%s1 + $0x70] sm:$0xff]
  %v43 = vld [vmem:[%s1 + $0x78] sm:$0xff]
  %44 = vmatprep.subr.mxu0 0.0
  %45 = vmatpush1.msra.mxu0 %v43
  %46 = vmatprep.subr.mxu0 0.0
  %47 = vmatpush1.msra.mxu0 %v42
  %48 = vmatprep.subr.mxu0 0.0
  %49 = vmatpush1.msra.mxu0 %v41
  %50 = vmatprep.subr.mxu0 0.0
  %51 = vmatpush1.msra.mxu0 %v40
  %52 = vmatprep.subr.mxu0 0.0
  %53 = vmatpush1.msra.mxu0 %v39
  %54 = vmatprep.subr.mxu0 0.0
  %55 = vmatpush1.msra.mxu0 %v38
  %56 = vmatprep.subr.mxu0 0.0
  %57 = vmatpush1.msra.mxu0 %v37
  %58 = vmatprep.subr.mxu0 0.0
  %59 = vmatpush1.msra.mxu0 %v36
  %60 = vmatprep.subr.mxu0 0.0
  %61 = vmatpush1.msra.mxu0 %v35
  %62 = vmatprep.subr.mxu0 0.0
  %63 = vmatpush1.msra.mxu0 %v34
  %64 = vmatprep.subr.mxu0 0.0
  %65 = vmatpush1.msra.mxu0 %v33
  %66 = vmatprep.subr.mxu0 0.0
  %67 = vmatpush1.msra.mxu0 %v32
  %68 = vmatprep.subr.mxu0 0.0
  %69 = vmatpush1.msra.mxu0 %v31
  %70 = vmatprep.subr.mxu0 0.0
  %71 = vmatpush1.msra.mxu0 %v30
  %72 = vmatprep.subr.mxu0 0.0
  %73 = vmatpush1.msra.mxu0 %v29
  %74 = vmatprep.subr.mxu0 0.0
  %75 = vmatpush1.msra.mxu0 %v28
  %76 = vmatprep.subr.mxu0 0.0
  %77 = vmatpush2.msra.mxu0 0.0
  %78 = vmatprep.subr.mxu0 0.0
  %79 = vmatpush2.msra.mxu0 0.0
  %80 = vmatprep.subr.mxu0 0.0
  %81 = vmatpush2.msra.mxu0 0.0
  %82 = vmatprep.subr.mxu0 0.0
  %83 = vmatpush2.msra.mxu0 0.0
  %84 = vmatprep.subr.mxu0 0.0
  %85 = vmatpush2.msra.mxu0 0.0
  %86 = vmatprep.subr.mxu0 0.0
  %87 = vmatpush2.msra.mxu0 0.0
  %88 = vmatprep.subr.mxu0 0.0
  %89 = vmatpush2.msra.mxu0 0.0
  %90 = vmatprep.subr.mxu0 0.0
  %91 = vmatpush2.msra.mxu0 0.0
  %92 = vmatprep.subr.mxu0 0.0
  %93 = vmatpush2.msra.mxu0 0.0
  %94 = vmatprep.subr.mxu0 0.0
  %95 = vmatpush2.msra.mxu0 0.0
  %96 = vmatprep.subr.mxu0 0.0
  %97 = vmatpush2.msra.mxu0 0.0
  %98 = vmatprep.subr.mxu0 0.0
  %99 = vmatpush2.msra.mxu0 0.0
  %100 = vmatprep.subr.mxu0 0.0
  %101 = vmatpush2.msra.mxu0 0.0
  %102 = vmatprep.subr.mxu0 0.0
  %103 = vmatpush2.msra.mxu0 0.0
  %104 = vmatprep.subr.mxu0 0.0
  %105 = vmatpush2.msra.mxu0 0.0
  %106 = vmatprep.subr.mxu0 0.0
  %107 = vmatpush2.msra.mxu0 0.0
  %108 = vmatprep.mubr.f32.mxu0 0.0
  %109 = vmatmul.mubr.f32.gmra.mxu0 %v24
  %v110 = vpop.f32.mrf.mxu0
  %v111 = vadd.f32 0.0, %v110
  %v112 = vpop.f32.mrf.mxu0
  %113 = vmatprep.mubr.f32.mxu0 0.0
  %114 = vmatmul.mubr.f32.gmra.mxu0 %v25
  %v115 = vpop.f32.mrf.mxu0
  %v116 = vadd.f32 0.0, %v115
  %v117 = vpop.f32.mrf.mxu0
  %118 = vmatprep.mubr.f32.mxu0 0.0
  %119 = vmatmul.mubr.f32.gmra.mxu0 %v26
  %v120 = vpop.f32.mrf.mxu0
  %v121 = vadd.f32 0.0, %v120
  %v122 = vpop.f32.mrf.mxu0
  %123 = vmatprep.mubr.f32.mxu0 0.0
  %124 = vmatmul.mubr.f32.gmra.mxu0 %v27
  %v125 = vpop.f32.mrf.mxu0
  %v126 = vadd.f32 0.0, %v125
  %v127 = vpop.f32.mrf.mxu0
  %128 = vdwg.mxu0
  %v129 = vadd.f32 %v20, %v111
  %v130 = vadd.f32 %v21, %v116
  %v131 = vadd.f32 %v22, %v121
  %v132 = vadd.f32 %v23, %v126
  %vm133 = vcmask 7168
  %134 = vst.msk [vmem:[%s2] sm:$0xff] %vm133, %v129
  %135 = vst.msk [vmem:[%s2 + $0x8] sm:$0xff] %vm133, %v130
  %136 = vst.msk [vmem:[%s2 + $0x10] sm:$0xff] %vm133, %v131
  %137 = vst.msk [vmem:[%s2 + $0x18] sm:$0xff] %vm133, %v132
  // Predicated region
  $region14: #{tpu_custom_call.1} parent=0 // pred_check
    _
  $region15: #{tpu_custom_call.1} parent=0 // pred_check_branch
    %139 = sbr.rel (0) target = $region17
  $region16: #{tpu_custom_call.1} parent=0 // pred_region
    _
  $region17: #{tpu_custom_call.1} parent=0 // pred_fallthru
    _
  // Predicated region
  $region18: #{tpu_custom_call.1} parent=0 // pred_check
    _
  $region19: #{tpu_custom_call.1} parent=0 // pred_check_branch
    %141 = sbr.rel (0) target = $region21
  $region20: #{tpu_custom_call.1} parent=0 // pred_region
    _
  $region21: #{tpu_custom_call.1} parent=0 // pred_fallthru
    _

</llo_original>
